<compile_context>
chip_gen: v5e
topology: v5e:2x2
jax: 0.10.0
libtpu: 0.0.40
codegen_flags: <defaults>
</compile_context>

<pallas_src>
import math
from typing import Tuple

import jax
import jax.numpy as jnp
from jax.experimental import pallas as pl
from jax.experimental.pallas import tpu as pltpu


def _level_geometry(H: int, W: int, L: int):
    kh = int(math.ceil(H / L))
    kw = int(math.ceil(W / L))
    h_pad1 = int(math.floor((kh * L - H) / 2))
    w_pad1 = int(math.floor((kw * L - W) / 2))
    return kh, kw, h_pad1, w_pad1


def _pick_c_tile(C: int, max_tile: int = 512) -> int:
    """Channel tile: full C if it is not a multiple of 128, else a multiple of
    128 that divides C and is <= max_tile (VMEM-safe on v5e/v6e/v7x)."""
    if C % 128 != 0:
        return C
    t = min(C, max_tile)
    t -= t % 128
    while t >= 128:
        if C % t == 0:
            return t
        t -= 128
    return C


def _make_fused_spp_kernel(levels: Tuple[int, ...], H: int, W: int, mode: str):
    """Kernel: NHWC block (n_blk, H, W, c_blk) -> one (n_blk, L*L, c_blk) tile
    per pyramid level (all static-unrolled, elementwise/sublane VPU reductions)."""

    def kernel(x_ref, *out_refs):
        x = x_ref[...]                     # (n_blk, H, W, c_blk); C on lanes
        n_blk = x.shape[0]
        c_blk = x.shape[3]
        if mode == "avg":
            x32 = x.astype(jnp.float32)    # f32 accumulation for avg

        for lev_idx, L in enumerate(levels):
            kh, kw, h_pad1, w_pad1 = _level_geometry(H, W, L)
            o_ref = out_refs[lev_idx]
            for i in range(L):
                hs = max(0, i * kh - h_pad1)
                he = min(H, (i + 1) * kh - h_pad1)
                for j in range(L):
                    ws = max(0, j * kw - w_pad1)
                    we = min(W, (j + 1) * kw - w_pad1)
                    wh, ww = he - hs, we - ws
                    idx = i * L + j
                    if wh <= 0 or ww <= 0:
                        # Window falls entirely into the zero padding.
                        o_ref[:, idx, :] = jnp.zeros((n_blk, c_blk), o_ref.dtype)
                        continue
                    touches_pad = (wh * ww) < (kh * kw)
                    if mode == "max":
                        win = x[:, hs:he, ws:we, :]
                        # reduce H-window rows elementwise, then W-window sublanes
                        red = jnp.max(jnp.max(win, axis=1), axis=1)   # (n_blk, c_blk)
                        if touches_pad:
                            # pad-before-pool: zeros participate in the max
                            red = jnp.maximum(red, jnp.zeros_like(red))
                        o_ref[:, idx, :] = red.astype(o_ref.dtype)
                    else:  # avg, count-include-pad semantics (pad zeros add 0 to sum)
                        win = x32[:, hs:he, ws:we, :]
                        s = jnp.sum(jnp.sum(win, axis=1), axis=1)     # (n_blk, c_blk) f32
                        o_ref[:, idx, :] = (s * (1.0 / (kh * kw))).astype(o_ref.dtype)

    return kernel


def spatial_pyramid_pool(x, levels, mode: str = "max"):
    """JAX/Pallas equivalent of SpatialPyramidPooling.forward.

    Args:
      x: (N, C, H, W) array (NCHW, like the PyTorch module).
      levels: tuple of ints.
      mode: "max" or "avg".

    Returns:
      (N, sum(C * L * L for L in levels)) array, channel-major per level
      (identical ordering to the PyTorch .view(N, -1) flatten).
    """
    if mode not in ("max", "avg"):
        raise ValueError(f'Unknown pooling type: {mode}, please use "max" or "avg".')
    levels = tuple(int(L) for L in levels)
    N, C, H, W = x.shape

    # Channels-last so C lands on the 128-lane axis inside the kernel.
    x_nhwc = jnp.transpose(x, (0, 2, 3, 1))            # (N, H, W, C)

    c_blk = _pick_c_tile(C)
    n_blk = 1                                          # grid over N -> pipelining + megacore
    grid = (N // n_blk, C // c_blk)

    kernel = _make_fused_spp_kernel(levels, H, W, mode)

    out_shapes = tuple(
        jax.ShapeDtypeStruct((N, L * L, C), x.dtype) for L in levels
    )
    in_specs = [
        pl.BlockSpec((n_blk, H, W, c_blk), lambda n, c: (n, 0, 0, c)),
    ]
    out_specs = [
        pl.BlockSpec((n_blk, L * L, c_blk), lambda n, c: (n, 0, c)) for L in levels
    ]

    outs = pl.pallas_call(
        kernel,
        out_shape=out_shapes,
        grid=grid,
        in_specs=in_specs,
        out_specs=out_specs,
        compiler_params=pltpu.CompilerParams(
            dimension_semantics=("parallel", "parallel")),
    )(x_nhwc)

    # Back to PyTorch channel-major ordering: (N, L*L, C) -> (N, C, L*L) -> flat.
    flat = [jnp.transpose(o, (0, 2, 1)).reshape(N, -1) for o in outs]
    return jnp.concatenate(flat, axis=1)


class SpatialPyramidPooling:
    """Stateless SPP module (no learnable parameters)."""

    def __init__(self, levels, mode: str = "max"):
        self.levels = tuple(levels)
        self.mode = mode

    def __call__(self, x):
        return spatial_pyramid_pool(x, self.levels, self.mode)

    def get_output_size(self, filters: int) -> int:
        return sum(filters * L * L for L in self.levels)


def _reference_spp(x, levels, mode="max"):
    """Pure-JAX reference (pad-before-pool, like the PyTorch module)."""
    N, C, H, W = x.shape
    outs = []
    for L in levels:
        kh = int(math.ceil(H / L))
        kw = int(math.ceil(W / L))
        hp = kh * L - H
        wp = kw * L - W
        xp = jnp.pad(x, ((0, 0), (0, 0), (hp // 2, hp - hp // 2),
                         (wp // 2, wp - wp // 2)))
        xr = xp.reshape(N, C, L, kh, L, kw)
        if mode == "max":
            pooled = xr.max(axis=(3, 5))
        else:
            pooled = xr.astype(jnp.float32).mean(axis=(3, 5)).astype(x.dtype)
        outs.append(pooled.reshape(N, -1))
    return jnp.concatenate(outs, axis=1)


if __name__ == "__main__":
    key = jax.random.PRNGKey(0)
    N, C, H, W = 2, 4, 16, 16
    x = jax.random.normal(key, (N, C, H, W), dtype=jnp.float32)

    levels = (1, 2, 3)  # level 3 exercises the padding path (ceil(16/3)=6 -> pad 1+1)

    # max mode
    spp_max = SpatialPyramidPooling(levels, mode="max")
    out_max = jax.block_until_ready(spp_max(x))
    expected_cols = spp_max.get_output_size(C)
    assert out_max.shape == (N, expected_cols), (out_max.shape, expected_cols)
    ref_max = _reference_spp(x, levels, mode="max")
    assert jnp.allclose(out_max, ref_max, atol=1e-6, rtol=1e-6), "max mode mismatch"

    # avg mode (f32 accumulation, count-include-pad)
    spp_avg = SpatialPyramidPooling(levels, mode="avg")
    out_avg = jax.block_until_ready(spp_avg(x))
    ref_avg = _reference_spp(x, levels, mode="avg")
    assert jnp.allclose(out_avg, ref_avg, atol=1e-5, rtol=1e-5), "avg mode mismatch"

    print("KERNEL_OK")
</pallas_src>

<mosaic_0001>
module attributes {stable_mosaic.version = 11 : i64} {
  func.func @kernel(%arg0: i32, %arg1: i32, %arg2: memref<1x16x16x4xf32, #tpu.memory_space<vmem>>, %arg3: memref<1x1x4xf32, #tpu.memory_space<vmem>>, %arg4: memref<1x4x4xf32, #tpu.memory_space<vmem>>, %arg5: memref<1x9x4xf32, #tpu.memory_space<vmem>>) attributes {dimension_semantics = [#tpu.dimension_semantics<parallel>, #tpu.dimension_semantics<parallel>], iteration_bounds = array<i64: 2, 1>, scalar_prefetch = 0 : i64, scratch_operands = 0 : i64, tpu.core_type = #tpu.core_type<tc>, window_params = [{transform_indices = @transform_0, window_bounds = array<i64: 1, 16, 16, 4>}, {transform_indices = @transform_1, window_bounds = array<i64: 1, 1, 4>}, {transform_indices = @transform_2, window_bounds = array<i64: 1, 4, 4>}, {transform_indices = @transform_3, window_bounds = array<i64: 1, 9, 4>}]} {
    %c0 = arith.constant 0 : index
    %c0_0 = arith.constant 0 : index
    %c0_1 = arith.constant 0 : index
    %c0_2 = arith.constant 0 : index
    %0 = vector.load %arg2[%c0, %c0_0, %c0_1, %c0_2] : memref<1x16x16x4xf32, #tpu.memory_space<vmem>>, vector<1x16x16x4xf32>
    %cst = arith.constant dense<0xFF800000> : vector<1x16x4xf32>
    %1 = vector.multi_reduction <maximumf>, %0, %cst [1] : vector<1x16x16x4xf32> to vector<1x16x4xf32>
    %cst_3 = arith.constant dense<0xFF800000> : vector<1x4xf32>
    %2 = vector.multi_reduction <maximumf>, %1, %cst_3 [1] : vector<1x16x4xf32> to vector<1x4xf32>
    %c0_4 = arith.constant 0 : index
    %c0_5 = arith.constant 0 : index
    %c0_6 = arith.constant 0 : index
    %3 = vector.load %arg3[%c0_4, %c0_5, %c0_6] : memref<1x1x4xf32, #tpu.memory_space<vmem>>, vector<1x1x4xf32>
    %4 = vector.shape_cast %3 : vector<1x1x4xf32> to vector<1x4xf32>
    %5 = vector.shape_cast %2 : vector<1x4xf32> to vector<1x1x4xf32>
    tpu.vector_store %arg3[%c0_4, %c0_5, %c0_6], %5 {strides = array<i32>} : memref<1x1x4xf32, #tpu.memory_space<vmem>>, vector<1x1x4xf32>,
    %6 = vector.extract_strided_slice %0 {offsets = [0, 0, 0, 0], sizes = [1, 8, 8, 4], strides = [1, 1, 1, 1]} : vector<1x16x16x4xf32> to vector<1x8x8x4xf32>
    %cst_7 = arith.constant dense<0xFF800000> : vector<1x8x4xf32>
    %7 = vector.multi_reduction <maximumf>, %6, %cst_7 [1] : vector<1x8x8x4xf32> to vector<1x8x4xf32>
    %cst_8 = arith.constant dense<0xFF800000> : vector<1x4xf32>
    %8 = vector.multi_reduction <maximumf>, %7, %cst_8 [1] : vector<1x8x4xf32> to vector<1x4xf32>
    %c0_9 = arith.constant 0 : index
    %c0_10 = arith.constant 0 : index
    %c0_11 = arith.constant 0 : index
    %9 = vector.load %arg4[%c0_9, %c0_10, %c0_11] : memref<1x4x4xf32, #tpu.memory_space<vmem>>, vector<1x1x4xf32>
    %10 = vector.shape_cast %9 : vector<1x1x4xf32> to vector<1x4xf32>
    %11 = vector.shape_cast %8 : vector<1x4xf32> to vector<1x1x4xf32>
    tpu.vector_store %arg4[%c0_9, %c0_10, %c0_11], %11 {strides = array<i32>} : memref<1x4x4xf32, #tpu.memory_space<vmem>>, vector<1x1x4xf32>,
    %12 = vector.extract_strided_slice %0 {offsets = [0, 0, 8, 0], sizes = [1, 8, 8, 4], strides = [1, 1, 1, 1]} : vector<1x16x16x4xf32> to vector<1x8x8x4xf32>
    %cst_12 = arith.constant dense<0xFF800000> : vector<1x8x4xf32>
    %13 = vector.multi_reduction <maximumf>, %12, %cst_12 [1] : vector<1x8x8x4xf32> to vector<1x8x4xf32>
    %cst_13 = arith.constant dense<0xFF800000> : vector<1x4xf32>
    %14 = vector.multi_reduction <maximumf>, %13, %cst_13 [1] : vector<1x8x4xf32> to vector<1x4xf32>
    %c0_14 = arith.constant 0 : index
    %c1 = arith.constant 1 : index
    %c0_15 = arith.constant 0 : index
    %15 = vector.load %arg4[%c0_14, %c1, %c0_15] : memref<1x4x4xf32, #tpu.memory_space<vmem>>, vector<1x1x4xf32>
    %16 = vector.shape_cast %15 : vector<1x1x4xf32> to vector<1x4xf32>
    %17 = vector.shape_cast %14 : vector<1x4xf32> to vector<1x1x4xf32>
    tpu.vector_store %arg4[%c0_14, %c1, %c0_15], %17 {strides = array<i32>} : memref<1x4x4xf32, #tpu.memory_space<vmem>>, vector<1x1x4xf32>,
    %18 = vector.extract_strided_slice %0 {offsets = [0, 8, 0, 0], sizes = [1, 8, 8, 4], strides = [1, 1, 1, 1]} : vector<1x16x16x4xf32> to vector<1x8x8x4xf32>
    %cst_16 = arith.constant dense<0xFF800000> : vector<1x8x4xf32>
    %19 = vector.multi_reduction <maximumf>, %18, %cst_16 [1] : vector<1x8x8x4xf32> to vector<1x8x4xf32>
    %cst_17 = arith.constant dense<0xFF800000> : vector<1x4xf32>
    %20 = vector.multi_reduction <maximumf>, %19, %cst_17 [1] : vector<1x8x4xf32> to vector<1x4xf32>
    %c0_18 = arith.constant 0 : index
    %c2 = arith.constant 2 : index
    %c0_19 = arith.constant 0 : index
    %21 = vector.load %arg4[%c0_18, %c2, %c0_19] : memref<1x4x4xf32, #tpu.memory_space<vmem>>, vector<1x1x4xf32>
    %22 = vector.shape_cast %21 : vector<1x1x4xf32> to vector<1x4xf32>
    %23 = vector.shape_cast %20 : vector<1x4xf32> to vector<1x1x4xf32>
    tpu.vector_store %arg4[%c0_18, %c2, %c0_19], %23 {strides = array<i32>} : memref<1x4x4xf32, #tpu.memory_space<vmem>>, vector<1x1x4xf32>,
    %24 = vector.extract_strided_slice %0 {offsets = [0, 8, 8, 0], sizes = [1, 8, 8, 4], strides = [1, 1, 1, 1]} : vector<1x16x16x4xf32> to vector<1x8x8x4xf32>
    %cst_20 = arith.constant dense<0xFF800000> : vector<1x8x4xf32>
    %25 = vector.multi_reduction <maximumf>, %24, %cst_20 [1] : vector<1x8x8x4xf32> to vector<1x8x4xf32>
    %cst_21 = arith.constant dense<0xFF800000> : vector<1x4xf32>
    %26 = vector.multi_reduction <maximumf>, %25, %cst_21 [1] : vector<1x8x4xf32> to vector<1x4xf32>
    %c0_22 = arith.constant 0 : index
    %c3 = arith.constant 3 : index
    %c0_23 = arith.constant 0 : index
    %27 = vector.load %arg4[%c0_22, %c3, %c0_23] : memref<1x4x4xf32, #tpu.memory_space<vmem>>, vector<1x1x4xf32>
    %28 = vector.shape_cast %27 : vector<1x1x4xf32> to vector<1x4xf32>
    %29 = vector.shape_cast %26 : vector<1x4xf32> to vector<1x1x4xf32>
    tpu.vector_store %arg4[%c0_22, %c3, %c0_23], %29 {strides = array<i32>} : memref<1x4x4xf32, #tpu.memory_space<vmem>>, vector<1x1x4xf32>,
    %30 = vector.extract_strided_slice %0 {offsets = [0, 0, 0, 0], sizes = [1, 5, 5, 4], strides = [1, 1, 1, 1]} : vector<1x16x16x4xf32> to vector<1x5x5x4xf32>
    %cst_24 = arith.constant dense<0xFF800000> : vector<1x5x4xf32>
    %31 = vector.multi_reduction <maximumf>, %30, %cst_24 [1] : vector<1x5x5x4xf32> to vector<1x5x4xf32>
    %cst_25 = arith.constant dense<0xFF800000> : vector<1x4xf32>
    %32 = vector.multi_reduction <maximumf>, %31, %cst_25 [1] : vector<1x5x4xf32> to vector<1x4xf32>
    %cst_26 = arith.constant 0.000000e+00 : f32
    %33 = vector.broadcast %cst_26 : f32 to vector<1x4xf32>
    %34 = arith.maximumf %32, %33 : vector<1x4xf32>
    %c0_27 = arith.constant 0 : index
    %c0_28 = arith.constant 0 : index
    %c0_29 = arith.constant 0 : index
    %35 = vector.load %arg5[%c0_27, %c0_28, %c0_29] : memref<1x9x4xf32, #tpu.memory_space<vmem>>, vector<1x1x4xf32>
    %36 = vector.shape_cast %35 : vector<1x1x4xf32> to vector<1x4xf32>
    %37 = vector.shape_cast %34 : vector<1x4xf32> to vector<1x1x4xf32>
    tpu.vector_store %arg5[%c0_27, %c0_28, %c0_29], %37 {strides = array<i32>} : memref<1x9x4xf32, #tpu.memory_space<vmem>>, vector<1x1x4xf32>,
    %38 = vector.extract_strided_slice %0 {offsets = [0, 0, 5, 0], sizes = [1, 5, 6, 4], strides = [1, 1, 1, 1]} : vector<1x16x16x4xf32> to vector<1x5x6x4xf32>
    %cst_30 = arith.constant dense<0xFF800000> : vector<1x6x4xf32>
    %39 = vector.multi_reduction <maximumf>, %38, %cst_30 [1] : vector<1x5x6x4xf32> to vector<1x6x4xf32>
    %cst_31 = arith.constant dense<0xFF800000> : vector<1x4xf32>
    %40 = vector.multi_reduction <maximumf>, %39, %cst_31 [1] : vector<1x6x4xf32> to vector<1x4xf32>
    %cst_32 = arith.constant 0.000000e+00 : f32
    %41 = vector.broadcast %cst_32 : f32 to vector<1x4xf32>
    %42 = arith.maximumf %40, %41 : vector<1x4xf32>
    %c0_33 = arith.constant 0 : index
    %c1_34 = arith.constant 1 : index
    %c0_35 = arith.constant 0 : index
    %43 = vector.load %arg5[%c0_33, %c1_34, %c0_35] : memref<1x9x4xf32, #tpu.memory_space<vmem>>, vector<1x1x4xf32>
    %44 = vector.shape_cast %43 : vector<1x1x4xf32> to vector<1x4xf32>
    %45 = vector.shape_cast %42 : vector<1x4xf32> to vector<1x1x4xf32>
    tpu.vector_store %arg5[%c0_33, %c1_34, %c0_35], %45 {strides = array<i32>} : memref<1x9x4xf32, #tpu.memory_space<vmem>>, vector<1x1x4xf32>,
    %46 = vector.extract_strided_slice %0 {offsets = [0, 0, 11, 0], sizes = [1, 5, 5, 4], strides = [1, 1, 1, 1]} : vector<1x16x16x4xf32> to vector<1x5x5x4xf32>
    %cst_36 = arith.constant dense<0xFF800000> : vector<1x5x4xf32>
    %47 = vector.multi_reduction <maximumf>, %46, %cst_36 [1] : vector<1x5x5x4xf32> to vector<1x5x4xf32>
    %cst_37 = arith.constant dense<0xFF800000> : vector<1x4xf32>
    %48 = vector.multi_reduction <maximumf>, %47, %cst_37 [1] : vector<1x5x4xf32> to vector<1x4xf32>
    %cst_38 = arith.constant 0.000000e+00 : f32
    %49 = vector.broadcast %cst_38 : f32 to vector<1x4xf32>
    %50 = arith.maximumf %48, %49 : vector<1x4xf32>
    %c0_39 = arith.constant 0 : index
    %c2_40 = arith.constant 2 : index
    %c0_41 = arith.constant 0 : index
    %51 = vector.load %arg5[%c0_39, %c2_40, %c0_41] : memref<1x9x4xf32, #tpu.memory_space<vmem>>, vector<1x1x4xf32>
    %52 = vector.shape_cast %51 : vector<1x1x4xf32> to vector<1x4xf32>
    %53 = vector.shape_cast %50 : vector<1x4xf32> to vector<1x1x4xf32>
    tpu.vector_store %arg5[%c0_39, %c2_40, %c0_41], %53 {strides = array<i32>} : memref<1x9x4xf32, #tpu.memory_space<vmem>>, vector<1x1x4xf32>,
    %54 = vector.extract_strided_slice %0 {offsets = [0, 5, 0, 0], sizes = [1, 6, 5, 4], strides = [1, 1, 1, 1]} : vector<1x16x16x4xf32> to vector<1x6x5x4xf32>
    %cst_42 = arith.constant dense<0xFF800000> : vector<1x5x4xf32>
    %55 = vector.multi_reduction <maximumf>, %54, %cst_42 [1] : vector<1x6x5x4xf32> to vector<1x5x4xf32>
    %cst_43 = arith.constant dense<0xFF800000> : vector<1x4xf32>
    %56 = vector.multi_reduction <maximumf>, %55, %cst_43 [1] : vector<1x5x4xf32> to vector<1x4xf32>
    %cst_44 = arith.constant 0.000000e+00 : f32
    %57 = vector.broadcast %cst_44 : f32 to vector<1x4xf32>
    %58 = arith.maximumf %56, %57 : vector<1x4xf32>
    %c0_45 = arith.constant 0 : index
    %c3_46 = arith.constant 3 : index
    %c0_47 = arith.constant 0 : index
    %59 = vector.load %arg5[%c0_45, %c3_46, %c0_47] : memref<1x9x4xf32, #tpu.memory_space<vmem>>, vector<1x1x4xf32>
    %60 = vector.shape_cast %59 : vector<1x1x4xf32> to vector<1x4xf32>
    %61 = vector.shape_cast %58 : vector<1x4xf32> to vector<1x1x4xf32>
    tpu.vector_store %arg5[%c0_45, %c3_46, %c0_47], %61 {strides = array<i32>} : memref<1x9x4xf32, #tpu.memory_space<vmem>>, vector<1x1x4xf32>,
    %62 = vector.extract_strided_slice %0 {offsets = [0, 5, 5, 0], sizes = [1, 6, 6, 4], strides = [1, 1, 1, 1]} : vector<1x16x16x4xf32> to vector<1x6x6x4xf32>
    %cst_48 = arith.constant dense<0xFF800000> : vector<1x6x4xf32>
    %63 = vector.multi_reduction <maximumf>, %62, %cst_48 [1] : vector<1x6x6x4xf32> to vector<1x6x4xf32>
    %cst_49 = arith.constant dense<0xFF800000> : vector<1x4xf32>
    %64 = vector.multi_reduction <maximumf>, %63, %cst_49 [1] : vector<1x6x4xf32> to vector<1x4xf32>
    %c0_50 = arith.constant 0 : index
    %c4 = arith.constant 4 : index
    %c0_51 = arith.constant 0 : index
    %65 = vector.load %arg5[%c0_50, %c4, %c0_51] : memref<1x9x4xf32, #tpu.memory_space<vmem>>, vector<1x1x4xf32>
    %66 = vector.shape_cast %65 : vector<1x1x4xf32> to vector<1x4xf32>
    %67 = vector.shape_cast %64 : vector<1x4xf32> to vector<1x1x4xf32>
    tpu.vector_store %arg5[%c0_50, %c4, %c0_51], %67 {strides = array<i32>} : memref<1x9x4xf32, #tpu.memory_space<vmem>>, vector<1x1x4xf32>,
    %68 = vector.extract_strided_slice %0 {offsets = [0, 5, 11, 0], sizes = [1, 6, 5, 4], strides = [1, 1, 1, 1]} : vector<1x16x16x4xf32> to vector<1x6x5x4xf32>
    %cst_52 = arith.constant dense<0xFF800000> : vector<1x5x4xf32>
    %69 = vector.multi_reduction <maximumf>, %68, %cst_52 [1] : vector<1x6x5x4xf32> to vector<1x5x4xf32>
    %cst_53 = arith.constant dense<0xFF800000> : vector<1x4xf32>
    %70 = vector.multi_reduction <maximumf>, %69, %cst_53 [1] : vector<1x5x4xf32> to vector<1x4xf32>
    %cst_54 = arith.constant 0.000000e+00 : f32
    %71 = vector.broadcast %cst_54 : f32 to vector<1x4xf32>
    %72 = arith.maximumf %70, %71 : vector<1x4xf32>
    %c0_55 = arith.constant 0 : index
    %c5 = arith.constant 5 : index
    %c0_56 = arith.constant 0 : index
    %73 = vector.load %arg5[%c0_55, %c5, %c0_56] : memref<1x9x4xf32, #tpu.memory_space<vmem>>, vector<1x1x4xf32>
    %74 = vector.shape_cast %73 : vector<1x1x4xf32> to vector<1x4xf32>
    %75 = vector.shape_cast %72 : vector<1x4xf32> to vector<1x1x4xf32>
    tpu.vector_store %arg5[%c0_55, %c5, %c0_56], %75 {strides = array<i32>} : memref<1x9x4xf32, #tpu.memory_space<vmem>>, vector<1x1x4xf32>,
    %76 = vector.extract_strided_slice %0 {offsets = [0, 11, 0, 0], sizes = [1, 5, 5, 4], strides = [1, 1, 1, 1]} : vector<1x16x16x4xf32> to vector<1x5x5x4xf32>
    %cst_57 = arith.constant dense<0xFF800000> : vector<1x5x4xf32>
    %77 = vector.multi_reduction <maximumf>, %76, %cst_57 [1] : vector<1x5x5x4xf32> to vector<1x5x4xf32>
    %cst_58 = arith.constant dense<0xFF800000> : vector<1x4xf32>
    %78 = vector.multi_reduction <maximumf>, %77, %cst_58 [1] : vector<1x5x4xf32> to vector<1x4xf32>
    %cst_59 = arith.constant 0.000000e+00 : f32
    %79 = vector.broadcast %cst_59 : f32 to vector<1x4xf32>
    %80 = arith.maximumf %78, %79 : vector<1x4xf32>
    %c0_60 = arith.constant 0 : index
    %c6 = arith.constant 6 : index
    %c0_61 = arith.constant 0 : index
    %81 = vector.load %arg5[%c0_60, %c6, %c0_61] : memref<1x9x4xf32, #tpu.memory_space<vmem>>, vector<1x1x4xf32>
    %82 = vector.shape_cast %81 : vector<1x1x4xf32> to vector<1x4xf32>
    %83 = vector.shape_cast %80 : vector<1x4xf32> to vector<1x1x4xf32>
    tpu.vector_store %arg5[%c0_60, %c6, %c0_61], %83 {strides = array<i32>} : memref<1x9x4xf32, #tpu.memory_space<vmem>>, vector<1x1x4xf32>,
    %84 = vector.extract_strided_slice %0 {offsets = [0, 11, 5, 0], sizes = [1, 5, 6, 4], strides = [1, 1, 1, 1]} : vector<1x16x16x4xf32> to vector<1x5x6x4xf32>
    %cst_62 = arith.constant dense<0xFF800000> : vector<1x6x4xf32>
    %85 = vector.multi_reduction <maximumf>, %84, %cst_62 [1] : vector<1x5x6x4xf32> to vector<1x6x4xf32>
    %cst_63 = arith.constant dense<0xFF800000> : vector<1x4xf32>
    %86 = vector.multi_reduction <maximumf>, %85, %cst_63 [1] : vector<1x6x4xf32> to vector<1x4xf32>
    %cst_64 = arith.constant 0.000000e+00 : f32
    %87 = vector.broadcast %cst_64 : f32 to vector<1x4xf32>
    %88 = arith.maximumf %86, %87 : vector<1x4xf32>
    %c0_65 = arith.constant 0 : index
    %c7 = arith.constant 7 : index
    %c0_66 = arith.constant 0 : index
    %89 = vector.load %arg5[%c0_65, %c7, %c0_66] : memref<1x9x4xf32, #tpu.memory_space<vmem>>, vector<1x1x4xf32>
    %90 = vector.shape_cast %89 : vector<1x1x4xf32> to vector<1x4xf32>
    %91 = vector.shape_cast %88 : vector<1x4xf32> to vector<1x1x4xf32>
    tpu.vector_store %arg5[%c0_65, %c7, %c0_66], %91 {strides = array<i32>} : memref<1x9x4xf32, #tpu.memory_space<vmem>>, vector<1x1x4xf32>,
    %92 = vector.extract_strided_slice %0 {offsets = [0, 11, 11, 0], sizes = [1, 5, 5, 4], strides = [1, 1, 1, 1]} : vector<1x16x16x4xf32> to vector<1x5x5x4xf32>
    %cst_67 = arith.constant dense<0xFF800000> : vector<1x5x4xf32>
    %93 = vector.multi_reduction <maximumf>, %92, %cst_67 [1] : vector<1x5x5x4xf32> to vector<1x5x4xf32>
    %cst_68 = arith.constant dense<0xFF800000> : vector<1x4xf32>
    %94 = vector.multi_reduction <maximumf>, %93, %cst_68 [1] : vector<1x5x4xf32> to vector<1x4xf32>
    %cst_69 = arith.constant 0.000000e+00 : f32
    %95 = vector.broadcast %cst_69 : f32 to vector<1x4xf32>
    %96 = arith.maximumf %94, %95 : vector<1x4xf32>
    %c0_70 = arith.constant 0 : index
    %c8 = arith.constant 8 : index
    %c0_71 = arith.constant 0 : index
    %97 = vector.load %arg5[%c0_70, %c8, %c0_71] : memref<1x9x4xf32, #tpu.memory_space<vmem>>, vector<1x1x4xf32>
    %98 = vector.shape_cast %97 : vector<1x1x4xf32> to vector<1x4xf32>
    %99 = vector.shape_cast %96 : vector<1x4xf32> to vector<1x1x4xf32>
    tpu.vector_store %arg5[%c0_70, %c8, %c0_71], %99 {strides = array<i32>} : memref<1x9x4xf32, #tpu.memory_space<vmem>>, vector<1x1x4xf32>,
    return
  }
  func.func @transform_0(%arg0: i32, %arg1: i32) -> (i32, i32, i32, i32) {
    %c0_i32 = arith.constant 0 : i32
    %c0_i32_0 = arith.constant 0 : i32
    %c0_i32_1 = arith.constant 0 : i32
    return %arg0, %c0_i32, %c0_i32_0, %arg1 : i32, i32, i32, i32
  }
  func.func @transform_1(%arg0: i32, %arg1: i32) -> (i32, i32, i32) {
    %c0_i32 = arith.constant 0 : i32
    %c0_i32_0 = arith.constant 0 : i32
    return %arg0, %c0_i32, %arg1 : i32, i32, i32
  }
  func.func @transform_2(%arg0: i32, %arg1: i32) -> (i32, i32, i32) {
    %c0_i32 = arith.constant 0 : i32
    %c0_i32_0 = arith.constant 0 : i32
    return %arg0, %c0_i32, %arg1 : i32, i32, i32
  }
  func.func @transform_3(%arg0: i32, %arg1: i32) -> (i32, i32, i32) {
    %c0_i32 = arith.constant 0 : i32
    %c0_i32_0 = arith.constant 0 : i32
    return %arg0, %c0_i32, %arg1 : i32, i32, i32
  }
}

</mosaic_0001>

<llo_original>
// kernel: tpu_custom_call.1
$region0: #{tpu_custom_call.1}
  #allocation0 [shape = 'u32[]', space=smem, size = 0x4, offset = 0x4, fixed_abs, tag = 'smem constant byte address 0x4 - core index']
  #allocation1 [shape = 'u32[72,128]{1,0:T(1,128)}', space=vmem, size = 0x9000, scoped, tag = 'internal scratch']
  %s0 = inlined_call_operand.vmem [shape: f32[2,16,16,4], index: 0, kind: input, shape index: {}]
  %s1 = inlined_call_operand.hbm [shape: f32[2,1,4], index: 1, kind: output, shape index: {0}]
  %s2 = inlined_call_operand.hbm [shape: f32[2,4,4], index: 2, kind: output, shape index: {1}]
  %s3 = inlined_call_operand.vmem [shape: f32[2,9,4], index: 3, kind: output, shape index: {2}]
  %4 = xla_tuple %s1, %s2, %s3
  %s5 = sld [smem:[#allocation0]]
  $region53: #{tpu_custom_call.1} parent=0
    _
  %s7 = ssub.s32 1, %s5
  %s8 = scalar_select 0, %s7, %s5
  $region1: #{tpu_custom_call.1} parent=0
    #allocation2 [shape = 'u8[1024]{0}', space=vmem, size = 0x400, scoped, tag = 'output window, operand 0']
    #allocation3 [shape = 's32[2]{0}', space=sflag, size = 0x8, scoped, tag = 'scoped memory for tpu_custom_call.1']
    #allocation4 [shape = 'u8[4096]{0}', space=vmem, size = 0x1000, scoped, tag = 'output window, operand 1']
    #allocation5 [shape = 's32[2]{0}', space=sflag, size = 0x8, scoped, tag = 'scoped memory for tpu_custom_call.1']
    %9 = vsyncpa [#allocation3], 0
    %s10 = scalar_lea.sflag [#allocation3], 1
    %11 = vsyncpa %s10, 0
    %12 = vsyncpa [#allocation5], 0
    %s13 = scalar_lea.sflag [#allocation5], 1
    %14 = vsyncpa %s13, 0
    loop: start=0, step=1, limit=4
    $region2: #{tpu_custom_call.1} parent=1 // loop_pre_header
      _
    $region3: #{tpu_custom_call.1} parent=1 // loop_header
      %s16 = sphi 0, %s20
      %p17 = scmp.ge.s32.totalorder %s16, 4
      %s23 = sphi 0, %s35
      %s24 = sphi 0, %s31
      %s25 = sphi 0, %s23
      %s26 = sphi 0, %s24
      %s27 = sphi 0, %s25
      %s28 = sphi 0, %s26
      %s40 = sphi 0, %s42
      %s43 = sphi 0, %s40
      %s44 = sphi 0, %s43
      %s60 = sphi 0, %s44
      %s68 = sphi 0, %s70
      %s71 = sphi 0, %s68
      %s72 = sphi 0, %s71
      %s88 = sphi 0, %s72
      %s96 = sphi 0, %s98
      %s99 = sphi 0, %s96
      %s100 = sphi 0, %s99
      %s116 = sphi 0, %s100
      %s124 = sphi 0, %s126
      %s127 = sphi 0, %s124
      %s128 = sphi 0, %s127
      %s144 = sphi 0, %s128
    $region4: #{tpu_custom_call.1} parent=1 // loop_header_branch
      %19 = sbr.rel (%p17) target = $region8
    $region5: #{tpu_custom_call.1} parent=1 // loop_body
      %s21 = ssub.s32 %s16, 1
      %s22 = ssub.s32 %s16, 2
      %s29 = sadd.s32 1, %s24
      %p30 = scmp.ge.s32.totalorder %s29, 1
      %s31 = scalar_select %p30, 0, %s29
      %s32 = sadd.s32 1, %s23
      %s33 = scalar_select %p30, %s32, %s23
      %p34 = scmp.ge.s32.totalorder %s33, 2
      %s35 = scalar_select %p34, 0, %s33
      %s36 = ssub.s32 %s23, %s35
      %s37 = ssub.s32 %s24, %s31
      %s38 = sor.u32 %s36, %s37
      %p39 = scmp.eq.s32.totalorder %s38, 0
      %s41 = sadd.s32 %s40, 1
      %s42 = scalar_select %p39, %s40, %s41
      %p45 = pneg %p39
      %p46 = scmp.eq.s32.totalorder %s16, 1
      %p47 = por %p45, %p46
      %p48 = scmp.ne.s32.totalorder %s40, %s43
      %p49 = scmp.eq.s32.totalorder %s16, 0
      %p50 = por %p48, %p49
      %p51 = scmp.ne.s32.totalorder %s40, %s43
      %p52 = scmp.eq.s32.totalorder %s21, 1
      %p53 = por %p51, %p52
      %p54 = scmp.ne.s32.totalorder %s43, %s44
      %p55 = scmp.eq.s32.totalorder %s21, 0
      %p56 = por %p54, %p55
      %p57 = scmp.ne.s32.totalorder %s43, %s44
      %p58 = scmp.eq.s32.totalorder %s22, 1
      %p59 = por %p57, %p58
      %p61 = scmp.ne.s32.totalorder %s44, %s60
      %p62 = scmp.eq.s32.totalorder %s22, 0
      %p63 = por %p61, %p62
      %s64 = ssub.s32 %s23, %s35
      %s65 = ssub.s32 %s24, %s31
      %s66 = sor.u32 %s64, %s65
      %p67 = scmp.eq.s32.totalorder %s66, 0
      %s69 = sadd.s32 %s68, 1
      %s70 = scalar_select %p67, %s68, %s69
      %p73 = pneg %p67
      %p74 = scmp.eq.s32.totalorder %s16, 1
      %p75 = por %p73, %p74
      %p76 = scmp.ne.s32.totalorder %s68, %s71
      %p77 = scmp.eq.s32.totalorder %s16, 0
      %p78 = por %p76, %p77
      %p79 = scmp.ne.s32.totalorder %s68, %s71
      %p80 = scmp.eq.s32.totalorder %s21, 1
      %p81 = por %p79, %p80
      %p82 = scmp.ne.s32.totalorder %s71, %s72
      %p83 = scmp.eq.s32.totalorder %s21, 0
      %p84 = por %p82, %p83
      %p85 = scmp.ne.s32.totalorder %s71, %s72
      %p86 = scmp.eq.s32.totalorder %s22, 1
      %p87 = por %p85, %p86
      %p89 = scmp.ne.s32.totalorder %s72, %s88
      %p90 = scmp.eq.s32.totalorder %s22, 0
      %p91 = por %p89, %p90
      %s92 = ssub.s32 %s23, %s35
      %s93 = ssub.s32 %s24, %s31
      %s94 = sor.u32 %s92, %s93
      %p95 = scmp.eq.s32.totalorder %s94, 0
      %s97 = sadd.s32 %s96, 1
      %s98 = scalar_select %p95, %s96, %s97
      %p101 = pneg %p95
      %p102 = scmp.eq.s32.totalorder %s16, 1
      %p103 = por %p101, %p102
      %p104 = scmp.ne.s32.totalorder %s96, %s99
      %p105 = scmp.eq.s32.totalorder %s16, 0
      %p106 = por %p104, %p105
      %p107 = scmp.ne.s32.totalorder %s96, %s99
      %p108 = scmp.eq.s32.totalorder %s21, 1
      %p109 = por %p107, %p108
      %p110 = scmp.ne.s32.totalorder %s99, %s100
      %p111 = scmp.eq.s32.totalorder %s21, 0
      %p112 = por %p110, %p111
      %p113 = scmp.ne.s32.totalorder %s99, %s100
      %p114 = scmp.eq.s32.totalorder %s22, 1
      %p115 = por %p113, %p114
      %p117 = scmp.ne.s32.totalorder %s100, %s116
      %p118 = scmp.eq.s32.totalorder %s22, 0
      %p119 = por %p117, %p118
      %s120 = ssub.s32 %s23, %s35
      %s121 = ssub.s32 %s24, %s31
      %s122 = sor.u32 %s120, %s121
      %p123 = scmp.eq.s32.totalorder %s122, 0
      %s125 = sadd.s32 %s124, 1
      %s126 = scalar_select %p123, %s124, %s125
      %p129 = pneg %p123
      %p130 = scmp.eq.s32.totalorder %s16, 1
      %p131 = por %p129, %p130
      %p132 = scmp.ne.s32.totalorder %s124, %s127
      %p133 = scmp.eq.s32.totalorder %s16, 0
      %p134 = por %p132, %p133
      %p135 = scmp.ne.s32.totalorder %s124, %s127
      %p136 = scmp.eq.s32.totalorder %s21, 1
      %p137 = por %p135, %p136
      %p138 = scmp.ne.s32.totalorder %s127, %s128
      %p139 = scmp.eq.s32.totalorder %s21, 0
      %p140 = por %p138, %p139
      %p141 = scmp.ne.s32.totalorder %s127, %s128
      %p142 = scmp.eq.s32.totalorder %s22, 1
      %p143 = por %p141, %p142
      %p145 = scmp.ne.s32.totalorder %s128, %s144
      %p146 = scmp.eq.s32.totalorder %s22, 0
      %p147 = por %p145, %p146
      %p148 = scmp.le.s32.totalorder 1, %s16
      %p149 = scmp.lt.s32.totalorder %s16, 3
      %p150 = pnand %p148, %p149
      %p151 = pneg %p150
      // Predicated region
      $region9: #{tpu_custom_call.1} parent=5 // pred_check
        _
      $region10: #{tpu_custom_call.1} parent=5 // pred_check_branch
        %153 = sbr.rel (%p150) target = $region12
      $region11: #{tpu_custom_call.1} parent=5 // pred_region
        %s154 = ssub.s32 %s16, 1
      $region12: #{tpu_custom_call.1} parent=5 // pred_fallthru
        _
      %p155 = scmp.lt.s32.totalorder %s16, 2
      // Predicated region
      $region13: #{tpu_custom_call.1} parent=5 // pred_check
        %p156 = pneg %p155
      $region14: #{tpu_custom_call.1} parent=5 // pred_check_branch
        %158 = sbr.rel (%p156) target = $region16
      $region15: #{tpu_custom_call.1} parent=5 // pred_region
        // Predicated region
        $region17: #{tpu_custom_call.1} parent=15 // pred_check
          %p159 = pneg %p50
        $region18: #{tpu_custom_call.1} parent=15 // pred_check_branch
          %161 = sbr.rel (%p159) target = $region20
        $region19: #{tpu_custom_call.1} parent=15 // pred_region
          %p162 = scmp.lt.s32.totalorder %s23, 1
          %s163 = scalar_select %p162, %s23, 1
          %p164 = scmp.lt.s32.totalorder %s24, 0
          %s165 = scalar_select %p164, %s24, 0
          %s166 = smul.addr %s163, 32
          %s167 = sadd.s32 %s165, %s166
          %s168 = smul.addr %s167, 8
          %s169 = scalar_lea.vmem %s0, %s168
        $region20: #{tpu_custom_call.1} parent=15 // pred_fallthru
          _
      $region16: #{tpu_custom_call.1} parent=5 // pred_fallthru
        _
      %p170 = scmp.le.s32.totalorder 1, %s16
      %p171 = scmp.lt.s32.totalorder %s16, 3
      %p172 = pnand %p170, %p171
      %p173 = pneg %p172
      // Predicated region
      $region21: #{tpu_custom_call.1} parent=5 // pred_check
        _
      $region22: #{tpu_custom_call.1} parent=5 // pred_check_branch
        %175 = sbr.rel (%p172) target = $region24
      $region23: #{tpu_custom_call.1} parent=5 // pred_region
        %s176 = ssub.s32 %s16, 1
        %p177 = scmp.lt.s32.totalorder %s25, 1
        %s178 = scalar_select %p177, %s25, 1
        %p179 = scmp.lt.s32.totalorder %s26, 0
        %s180 = scalar_select %p179, %s26, 0
        %s181 = smul.addr %s178, 32
        %s182 = sadd.s32 %s180, %s181
        %s183 = smul.addr %s182, 8
        %s184 = scalar_lea.vmem %s0, %s183
        %p185 = pneg %p56
        %p186 = pneg %p53
        %p187 = pneg %p84
        %p188 = pneg %p81
        %s189 = sand.u32 %s71, 1
        %s190 = scalar_lea.sflag [#allocation3], %s189
        %s191 = sand.u32 %s71, 1
        %s192 = scalar_lea.vmem [#allocation2], %s191
        %p193 = pneg %p112
        %p194 = pneg %p109
        %s195 = sand.u32 %s99, 1
        %s196 = scalar_lea.sflag [#allocation5], %s195
        %s197 = sand.u32 %s99, 1
        %s198 = smul.addr %s197, 4
        %s199 = scalar_lea.vmem [#allocation4], %s198
        %p200 = pneg %p140
        %p201 = pneg %p137
        %p202 = scmp.lt.s32.totalorder %s25, 1
        %s203 = scalar_select %p202, %s25, 1
        %p204 = scmp.lt.s32.totalorder %s26, 0
        %s205 = scalar_select %p204, %s26, 0
        %s206 = smul.addr %s203, 2
        %s207 = sadd.s32 %s205, %s206
        %s208 = smul.addr %s207, 8
        %s209 = scalar_lea.vmem %s3, %s208
        %p210 = scmp.lt.s32.totalorder %s25, 1
        %s211 = scalar_select %p210, %s25, 1
        %p212 = scmp.lt.s32.totalorder %s26, 0
        %s213 = scalar_select %p212, %s26, 0
        %s214 = smul.addr %s211, 32
        %s215 = sadd.s32 %s213, %s214
        %s216 = smul.addr %s215, 8
        %s217 = scalar_lea.vmem %s0, %s216
        %p218 = scmp.lt.s32.totalorder %s25, 1
        %s219 = scalar_select %p218, %s25, 1
        %p220 = scmp.lt.s32.totalorder %s26, 0
        %s221 = scalar_select %p220, %s26, 0
        %s222 = smul.addr %s219, 2
        %s223 = sadd.s32 %s221, %s222
        %s224 = smul.addr %s223, 8
        %s225 = scalar_lea.vmem %s3, %s224
        %v226 = vld [vmem:[%s217] sm:$0xff]
        %v227 = vld [vmem:[%s217 + $0x8] sm:$0xff]
        %v228 = vld [vmem:[%s217 + $0x10] sm:$0xff]
        %v229 = vld [vmem:[%s217 + $0x18] sm:$0xff]
        %v230 = vld [vmem:[%s217 + $0x20] sm:$0xff]
        %v231 = vld [vmem:[%s217 + $0x28] sm:$0xff]
        %v232 = vld [vmem:[%s217 + $0x30] sm:$0xff]
        %v233 = vld [vmem:[%s217 + $0x38] sm:$0xff]
        %v234 = vld [vmem:[%s217 + $0x40] sm:$0xff]
        %v235 = vld [vmem:[%s217 + $0x48] sm:$0xff]
        %v236 = vld [vmem:[%s217 + $0x50] sm:$0xff]
        %v237 = vld [vmem:[%s217 + $0x58] sm:$0xff]
        %v238 = vld [vmem:[%s217 + $0x60] sm:$0xff]
        %v239 = vld [vmem:[%s217 + $0x68] sm:$0xff]
        %v240 = vld [vmem:[%s217 + $0x70] sm:$0xff]
        %v241 = vld [vmem:[%s217 + $0x78] sm:$0xff]
        %v242 = vld [vmem:[%s217 + $0x80] sm:$0xff]
        %v243 = vld [vmem:[%s217 + $0x88] sm:$0xff]
        %v244 = vld [vmem:[%s217 + $0x90] sm:$0xff]
        %v245 = vld [vmem:[%s217 + $0x98] sm:$0xff]
        %v246 = vld [vmem:[%s217 + $0xa0] sm:$0xff]
        %v247 = vld [vmem:[%s217 + $0xa8] sm:$0xff]
        %v248 = vld [vmem:[%s217 + $0xb0] sm:$0xff]
        %v249 = vld [vmem:[%s217 + $0xb8] sm:$0xff]
        %v250 = vld [vmem:[%s217 + $0xc0] sm:$0xff]
        %v251 = vld [vmem:[%s217 + $0xc8] sm:$0xff]
        %v252 = vld [vmem:[%s217 + $0xd0] sm:$0xff]
        %v253 = vld [vmem:[%s217 + $0xd8] sm:$0xff]
        %v254 = vld [vmem:[%s217 + $0xe0] sm:$0xff]
        %v255 = vld [vmem:[%s217 + $0xe8] sm:$0xff]
        %v256 = vld [vmem:[%s217 + $0xf0] sm:$0xff]
        %v257 = vld [vmem:[%s217 + $0xf8] sm:$0xff]
        %vm258 = vcmask 31744
        %v259 = vsel %vm258, %v226, -inf
        %v260 = vsel %vm258, %v228, -inf
        %v261 = vsel %vm258, %v230, -inf
        %v262 = vmax.f32 %v259, %v261
        %v263 = vsel %vm258, %v232, -inf
        %v264 = vmax.f32 %v260, %v263
        %v265 = vsel %vm258, %v234, -inf
        %v266 = vmax.f32 %v262, %v265
        %v267 = vsel %vm258, %v236, -inf
        %v268 = vmax.f32 %v264, %v267
        %v269 = vsel %vm258, %v238, -inf
        %v270 = vmax.f32 %v266, %v269
        %v271 = vsel %vm258, %v240, -inf
        %v272 = vmax.f32 %v268, %v271
        %v273 = vsel %vm258, %v242, -inf
        %v274 = vmax.f32 %v270, %v273
        %v275 = vsel %vm258, %v244, -inf
        %v276 = vmax.f32 %v272, %v275
        %v277 = vsel %vm258, %v246, -inf
        %v278 = vmax.f32 %v274, %v277
        %v279 = vsel %vm258, %v248, -inf
        %v280 = vmax.f32 %v276, %v279
        %v281 = vsel %vm258, %v250, -inf
        %v282 = vmax.f32 %v278, %v281
        %v283 = vsel %vm258, %v252, -inf
        %v284 = vmax.f32 %v280, %v283
        %v285 = vsel %vm258, %v254, -inf
        %v286 = vmax.f32 %v282, %v285
        %v287 = vsel %vm258, %v256, -inf
        %v288 = vmax.f32 %v284, %v287
        %v289 = vmax.f32 %v286, %v288
        %v290 = vsel %vm258, %v227, -inf
        %v291 = vsel %vm258, %v229, -inf
        %v292 = vsel %vm258, %v231, -inf
        %v293 = vmax.f32 %v290, %v292
        %v294 = vsel %vm258, %v233, -inf
        %v295 = vmax.f32 %v291, %v294
        %v296 = vsel %vm258, %v235, -inf
        %v297 = vmax.f32 %v293, %v296
        %v298 = vsel %vm258, %v237, -inf
        %v299 = vmax.f32 %v295, %v298
        %v300 = vsel %vm258, %v239, -inf
        %v301 = vmax.f32 %v297, %v300
        %v302 = vsel %vm258, %v241, -inf
        %v303 = vmax.f32 %v299, %v302
        %v304 = vsel %vm258, %v243, -inf
        %v305 = vmax.f32 %v301, %v304
        %v306 = vsel %vm258, %v245, -inf
        %v307 = vmax.f32 %v303, %v306
        %v308 = vsel %vm258, %v247, -inf
        %v309 = vmax.f32 %v305, %v308
        %v310 = vsel %vm258, %v249, -inf
        %v311 = vmax.f32 %v307, %v310
        %v312 = vsel %vm258, %v251, -inf
        %v313 = vmax.f32 %v309, %v312
        %v314 = vsel %vm258, %v253, -inf
        %v315 = vmax.f32 %v311, %v314
        %v316 = vsel %vm258, %v255, -inf
        %v317 = vmax.f32 %v313, %v316
        %v318 = vsel %vm258, %v257, -inf
        %v319 = vmax.f32 %v315, %v318
        %v320 = vmax.f32 %v317, %v319
        %v321 = vsel %vm258, %v289, -inf
        %v322 = vsel %vm258, %v320, -inf
        %v323 = vmax.f32 %v321, %v322
        %v324 = vrot.slane %v323, 4
        %v325 = vmax.f32 %v323, %v324
        %v326 = vrot.slane %v325, 2
        %v327 = vmax.f32 %v325, %v326
        %v328 = vrot.slane %v327, 1
        %v329 = vmax.f32 %v327, %v328
        %vm330 = vcmask 24576
        %331 = vst.msk [vmem:[%s192] sm:$0x1] %vm330, %v329
        %v332 = vmax.f32 %v259, %v265
        %v333 = vmax.f32 %v260, %v267
        %v334 = vmax.f32 %v261, %v269
        %v335 = vmax.f32 %v263, %v271
        %v336 = vmax.f32 %v332, %v333
        %v337 = vmax.f32 %v334, %v335
        %v338 = vmax.f32 %v336, %v337
        %v339 = vsel %vm258, %v338, -inf
        %v340 = vrot.slane %v339, 4
        %v341 = vmax.f32 %v339, %v340
        %v342 = vrot.slane %v341, 2
        %v343 = vmax.f32 %v341, %v342
        %v344 = vrot.slane %v343, 1
        %v345 = vmax.f32 %v343, %v344
        %346 = vst.msk [vmem:[%s199] sm:$0x1] %vm330, %v345
        %v347 = vmax.f32 %v290, %v296
        %v348 = vmax.f32 %v291, %v298
        %v349 = vmax.f32 %v292, %v300
        %v350 = vmax.f32 %v294, %v302
        %v351 = vmax.f32 %v347, %v348
        %v352 = vmax.f32 %v349, %v350
        %v353 = vmax.f32 %v351, %v352
        %v354 = vsel %vm258, %v353, -inf
        %v355 = vrot.slane %v354, 4
        %v356 = vmax.f32 %v354, %v355
        %v357 = vrot.slane %v356, 2
        %v358 = vmax.f32 %v356, %v357
        %v359 = vrot.slane %v358, 1
        %v360 = vmax.f32 %v358, %v359
        %361 = vst.msk [vmem:[%s199 + $0x1] sm:$0x1] %vm330, %v360
        %v362 = vmax.f32 %v273, %v281
        %v363 = vmax.f32 %v275, %v283
        %v364 = vmax.f32 %v277, %v285
        %v365 = vmax.f32 %v279, %v287
        %v366 = vmax.f32 %v362, %v363
        %v367 = vmax.f32 %v364, %v365
        %v368 = vmax.f32 %v366, %v367
        %v369 = vsel %vm258, %v368, -inf
        %v370 = vrot.slane %v369, 4
        %v371 = vmax.f32 %v369, %v370
        %v372 = vrot.slane %v371, 2
        %v373 = vmax.f32 %v371, %v372
        %v374 = vrot.slane %v373, 1
        %v375 = vmax.f32 %v373, %v374
        %376 = vst.msk [vmem:[%s199 + $0x2] sm:$0x1] %vm330, %v375
        %v377 = vmax.f32 %v304, %v312
        %v378 = vmax.f32 %v306, %v314
        %v379 = vmax.f32 %v308, %v316
        %v380 = vmax.f32 %v310, %v318
        %v381 = vmax.f32 %v377, %v378
        %v382 = vmax.f32 %v379, %v380
        %v383 = vmax.f32 %v381, %v382
        %v384 = vsel %vm258, %v383, -inf
        %v385 = vrot.slane %v384, 4
        %v386 = vmax.f32 %v384, %v385
        %v387 = vrot.slane %v386, 2
        %v388 = vmax.f32 %v386, %v387
        %v389 = vrot.slane %v388, 1
        %v390 = vmax.f32 %v388, %v389
        %391 = vst.msk [vmem:[%s199 + $0x3] sm:$0x1] %vm330, %v390
        %vm392 = vcmask 28672
        %v393 = vsel %vm392, %v226, -inf
        %v394 = vsel %vm392, %v228, -inf
        %v395 = vsel %vm392, %v230, -inf
        %v396 = vsel %vm392, %v232, -inf
        %v397 = vsel %vm392, %v234, -inf
        %v398 = vmax.f32 %v393, %v397
        %v399 = vmax.f32 %v398, %v394
        %v400 = vmax.f32 %v395, %v396
        %v401 = vmax.f32 %v399, %v400
        %v402 = vsel %vm392, %v401, -inf
        %v403 = vrot.slane %v402, 4
        %v404 = vmax.f32 %v402, %v403
        %v405 = vrot.slane %v404, 2
        %v406 = vmax.f32 %v404, %v405
        %v407 = vrot.slane %v406, 1
        %v408 = vmax.f32 %v406, %v407
        %v409 = vmax.f32 %v408, 0.0
        %410 = vst.msk [vmem:[%s225] sm:$0x1] %vm330, %v409
        %vm411 = vcmask 31749
        %v412 = vsel %vm411, %v226, -inf
        %v413 = vsel %vm411, %v228, -inf
        %v414 = vsel %vm411, %v230, -inf
        %v415 = vmax.f32 %v412, %v414
        %v416 = vsel %vm411, %v232, -inf
        %v417 = vmax.f32 %v413, %v416
        %v418 = vsel %vm411, %v234, -inf
        %v419 = vmax.f32 %v415, %v418
        %v420 = vmax.f32 %v419, %v417
        %vm421 = vcmask 26624
        %v422 = vsel %vm421, %v227, -inf
        %v423 = vsel %vm421, %v229, -inf
        %v424 = vsel %vm421, %v231, -inf
        %v425 = vmax.f32 %v422, %v424
        %v426 = vsel %vm421, %v233, -inf
        %v427 = vmax.f32 %v423, %v426
        %v428 = vsel %vm421, %v235, -inf
        %v429 = vmax.f32 %v425, %v428
        %v430 = vmax.f32 %v429, %v427
        %v431 = vsel %vm411, %v420, -inf
        %v432 = vsel %vm421, %v430, -inf
        %v433 = vmax.f32 %v431, %v432
        %v434 = vrot.slane %v433, 4
        %v435 = vmax.f32 %v433, %v434
        %v436 = vrot.slane %v435, 2
        %v437 = vmax.f32 %v435, %v436
        %v438 = vrot.slane %v437, 1
        %v439 = vmax.f32 %v437, %v438
        %v440 = vmax.f32 %v439, 0.0
        %441 = vst.msk [vmem:[%s225 + $0x1] sm:$0x1] %vm330, %v440
        %vm442 = vcmask 31747
        %v443 = vsel %vm442, %v227, -inf
        %v444 = vsel %vm442, %v229, -inf
        %v445 = vsel %vm442, %v231, -inf
        %v446 = vsel %vm442, %v233, -inf
        %v447 = vsel %vm442, %v235, -inf
        %v448 = vmax.f32 %v443, %v447
        %v449 = vmax.f32 %v448, %v444
        %v450 = vmax.f32 %v445, %v446
        %v451 = vmax.f32 %v449, %v450
        %v452 = vsel %vm442, %v451, -inf
        %v453 = vrot.slane %v452, 4
        %v454 = vmax.f32 %v452, %v453
        %v455 = vrot.slane %v454, 2
        %v456 = vmax.f32 %v454, %v455
        %v457 = vrot.slane %v456, 1
        %v458 = vmax.f32 %v456, %v457
        %v459 = vmax.f32 %v458, 0.0
        %460 = vst.msk [vmem:[%s225 + $0x2] sm:$0x1] %vm330, %v459
        %v461 = vsel %vm392, %v236, -inf
        %v462 = vsel %vm392, %v238, -inf
        %v463 = vsel %vm392, %v240, -inf
        %v464 = vsel %vm392, %v242, -inf
        %v465 = vsel %vm392, %v244, -inf
        %v466 = vmax.f32 %v461, %v465
        %v467 = vsel %vm392, %v246, -inf
        %v468 = vmax.f32 %v462, %v467
        %v469 = vmax.f32 %v466, %v468
        %v470 = vmax.f32 %v463, %v464
        %v471 = vmax.f32 %v469, %v470
        %v472 = vsel %vm392, %v471, -inf
        %v473 = vrot.slane %v472, 4
        %v474 = vmax.f32 %v472, %v473
        %v475 = vrot.slane %v474, 2
        %v476 = vmax.f32 %v474, %v475
        %v477 = vrot.slane %v476, 1
        %v478 = vmax.f32 %v476, %v477
        %v479 = vmax.f32 %v478, 0.0
        %480 = vst.msk [vmem:[%s225 + $0x3] sm:$0x1] %vm330, %v479
        %v481 = vsel %vm411, %v236, -inf
        %v482 = vsel %vm411, %v238, -inf
        %v483 = vsel %vm411, %v240, -inf
        %v484 = vmax.f32 %v481, %v483
        %v485 = vsel %vm411, %v242, -inf
        %v486 = vmax.f32 %v482, %v485
        %v487 = vsel %vm411, %v244, -inf
        %v488 = vmax.f32 %v484, %v487
        %v489 = vsel %vm411, %v246, -inf
        %v490 = vmax.f32 %v486, %v489
        %v491 = vmax.f32 %v488, %v490
        %v492 = vsel %vm421, %v237, -inf
        %v493 = vsel %vm421, %v239, -inf
        %v494 = vsel %vm421, %v241, -inf
        %v495 = vmax.f32 %v492, %v494
        %v496 = vsel %vm421, %v243, -inf
        %v497 = vmax.f32 %v493, %v496
        %v498 = vsel %vm421, %v245, -inf
        %v499 = vmax.f32 %v495, %v498
        %v500 = vsel %vm421, %v247, -inf
        %v501 = vmax.f32 %v497, %v500
        %v502 = vmax.f32 %v499, %v501
        %v503 = vsel %vm411, %v491, -inf
        %v504 = vsel %vm421, %v502, -inf
        %v505 = vmax.f32 %v503, %v504
        %v506 = vrot.slane %v505, 4
        %v507 = vmax.f32 %v505, %v506
        %v508 = vrot.slane %v507, 2
        %v509 = vmax.f32 %v507, %v508
        %v510 = vrot.slane %v509, 1
        %v511 = vmax.f32 %v509, %v510
        %512 = vst.msk [vmem:[%s225 + $0x4] sm:$0x1] %vm330, %v511
        %v513 = vsel %vm442, %v237, -inf
        %v514 = vsel %vm442, %v239, -inf
        %v515 = vsel %vm442, %v241, -inf
        %v516 = vsel %vm442, %v243, -inf
        %v517 = vsel %vm442, %v245, -inf
        %v518 = vmax.f32 %v513, %v517
        %v519 = vsel %vm442, %v247, -inf
        %v520 = vmax.f32 %v514, %v519
        %v521 = vmax.f32 %v518, %v520
        %v522 = vmax.f32 %v515, %v516
        %v523 = vmax.f32 %v521, %v522
        %v524 = vsel %vm442, %v523, -inf
        %v525 = vrot.slane %v524, 4
        %v526 = vmax.f32 %v524, %v525
        %v527 = vrot.slane %v526, 2
        %v528 = vmax.f32 %v526, %v527
        %v529 = vrot.slane %v528, 1
        %v530 = vmax.f32 %v528, %v529
        %v531 = vmax.f32 %v530, 0.0
        %532 = vst.msk [vmem:[%s225 + $0x5] sm:$0x1] %vm330, %v531
        %v533 = vsel %vm392, %v248, -inf
        %v534 = vsel %vm392, %v250, -inf
        %v535 = vsel %vm392, %v252, -inf
        %v536 = vsel %vm392, %v254, -inf
        %v537 = vsel %vm392, %v256, -inf
        %v538 = vmax.f32 %v533, %v537
        %v539 = vmax.f32 %v538, %v534
        %v540 = vmax.f32 %v535, %v536
        %v541 = vmax.f32 %v539, %v540
        %v542 = vsel %vm392, %v541, -inf
        %v543 = vrot.slane %v542, 4
        %v544 = vmax.f32 %v542, %v543
        %v545 = vrot.slane %v544, 2
        %v546 = vmax.f32 %v544, %v545
        %v547 = vrot.slane %v546, 1
        %v548 = vmax.f32 %v546, %v547
        %v549 = vmax.f32 %v548, 0.0
        %550 = vst.msk [vmem:[%s225 + $0x6] sm:$0x1] %vm330, %v549
        %v551 = vsel %vm411, %v248, -inf
        %v552 = vsel %vm411, %v250, -inf
        %v553 = vsel %vm411, %v252, -inf
        %v554 = vmax.f32 %v551, %v553
        %v555 = vsel %vm411, %v254, -inf
        %v556 = vmax.f32 %v552, %v555
        %v557 = vsel %vm411, %v256, -inf
        %v558 = vmax.f32 %v554, %v557
        %v559 = vmax.f32 %v558, %v556
        %v560 = vsel %vm421, %v249, -inf
        %v561 = vsel %vm421, %v251, -inf
        %v562 = vsel %vm421, %v253, -inf
        %v563 = vmax.f32 %v560, %v562
        %v564 = vsel %vm421, %v255, -inf
        %v565 = vmax.f32 %v561, %v564
        %v566 = vsel %vm421, %v257, -inf
        %v567 = vmax.f32 %v563, %v566
        %v568 = vmax.f32 %v567, %v565
        %v569 = vsel %vm411, %v559, -inf
        %v570 = vsel %vm421, %v568, -inf
        %v571 = vmax.f32 %v569, %v570
        %v572 = vrot.slane %v571, 4
        %v573 = vmax.f32 %v571, %v572
        %v574 = vrot.slane %v573, 2
        %v575 = vmax.f32 %v573, %v574
        %v576 = vrot.slane %v575, 1
        %v577 = vmax.f32 %v575, %v576
        %v578 = vmax.f32 %v577, 0.0
        %579 = vst.msk [vmem:[%s225 + $0x7] sm:$0x1] %vm330, %v578
        %v580 = vsel %vm442, %v249, -inf
        %v581 = vsel %vm442, %v251, -inf
        %v582 = vsel %vm442, %v253, -inf
        %v583 = vsel %vm442, %v255, -inf
        %v584 = vsel %vm442, %v257, -inf
        %v585 = vmax.f32 %v580, %v584
        %v586 = vmax.f32 %v585, %v581
        %v587 = vmax.f32 %v582, %v583
        %v588 = vmax.f32 %v586, %v587
        %v589 = vsel %vm442, %v588, -inf
        %v590 = vrot.slane %v589, 4
        %v591 = vmax.f32 %v589, %v590
        %v592 = vrot.slane %v591, 2
        %v593 = vmax.f32 %v591, %v592
        %v594 = vrot.slane %v593, 1
        %v595 = vmax.f32 %v593, %v594
        %v596 = vmax.f32 %v595, 0.0
        %597 = vst.msk [vmem:[%s225 + $0x8] sm:$0x1] %vm330, %v596
        %s598 = sand.u32 %s71, 1
        %s599 = scalar_lea.sflag [#allocation3], %s598
        %s600 = sand.u32 %s71, 1
        %s601 = scalar_lea.vmem [#allocation2], %s600
        %s602 = sand.u32 %s99, 1
        %s603 = scalar_lea.sflag [#allocation5], %s602
        %s604 = sand.u32 %s99, 1
        %s605 = smul.addr %s604, 4
        %s606 = scalar_lea.vmem [#allocation4], %s605
        %p607 = scmp.lt.s32.totalorder %s25, 1
        %s608 = scalar_select %p607, %s25, 1
        %p609 = scmp.lt.s32.totalorder %s26, 0
        %s610 = scalar_select %p609, %s26, 0
        %s611 = smul.addr %s608, 2
        %s612 = sadd.s32 %s610, %s611
        %s613 = smul.addr %s612, 8
        %s614 = scalar_lea.vmem %s3, %s613
        // Predicated region
        $region25: #{tpu_custom_call.1} parent=23 // pred_check
          %p615 = pneg %p81
        $region26: #{tpu_custom_call.1} parent=23 // pred_check_branch
          %617 = sbr.rel (%p615) target = $region28
        $region27: #{tpu_custom_call.1} parent=23 // pred_region
          %619 = vsyncadd %s599, 0
          %s620 = sadd.s32 %s26, %s25
          %s621 = scalar_lea.hbm %s1, %s620
          %s623 = sshll.u32 %s601, 4
          %s624 = int_to_ptr.vmem [resolvable:$true] %s623
          %s625 = sshll.u32 %s621, 4
          %s626 = int_to_ptr.hbm [resolvable:$true] %s625
          %628 = dma.vmem_to_hbm [thread:$0]  %s624, 16, %s626, %s599
        $region28: #{tpu_custom_call.1} parent=23 // pred_fallthru
          _
        // Predicated region
        $region29: #{tpu_custom_call.1} parent=23 // pred_check
          %p629 = pneg %p109
        $region30: #{tpu_custom_call.1} parent=23 // pred_check_branch
          %631 = sbr.rel (%p629) target = $region32
        $region31: #{tpu_custom_call.1} parent=23 // pred_region
          %633 = vsyncadd %s603, 0
          %s634 = sadd.s32 %s26, %s25
          %s635 = smul.addr %s634, 4
          %s636 = scalar_lea.hbm %s2, %s635
          %s638 = sshll.u32 %s606, 4
          %s639 = int_to_ptr.vmem [resolvable:$true] %s638
          %s640 = sshll.u32 %s636, 4
          %s641 = int_to_ptr.hbm [resolvable:$true] %s640
          %643 = dma.vmem_to_hbm [thread:$0]  %s639, 64, %s641, %s603
        $region32: #{tpu_custom_call.1} parent=23 // pred_fallthru
          _
        // Predicated region
        $region33: #{tpu_custom_call.1} parent=23 // pred_check
          %p644 = pneg %p137
        $region34: #{tpu_custom_call.1} parent=23 // pred_check_branch
          %646 = sbr.rel (%p644) target = $region36
        $region35: #{tpu_custom_call.1} parent=23 // pred_region
          _
        $region36: #{tpu_custom_call.1} parent=23 // pred_fallthru
          _
      $region24: #{tpu_custom_call.1} parent=5 // pred_fallthru
        _
      %p647 = scmp.le.s32.totalorder 2, %s16
      // Predicated region
      $region37: #{tpu_custom_call.1} parent=5 // pred_check
        %p648 = pneg %p647
      $region38: #{tpu_custom_call.1} parent=5 // pred_check_branch
        %650 = sbr.rel (%p648) target = $region40
      $region39: #{tpu_custom_call.1} parent=5 // pred_region
        %s651 = ssub.s32 %s16, 2
        // Predicated region
        $region41: #{tpu_custom_call.1} parent=39 // pred_check
          %p652 = pneg %p87
        $region42: #{tpu_custom_call.1} parent=39 // pred_check_branch
          %654 = sbr.rel (%p652) target = $region44
        $region43: #{tpu_custom_call.1} parent=39 // pred_region
          %s655 = sand.u32 %s72, 1
          %s656 = scalar_lea.sflag [#allocation3], %s655
          %s657 = sand.u32 %s72, 1
          %s658 = scalar_lea.vmem [#allocation2], %s657
          %660 = dma.done %s656, 16
        $region44: #{tpu_custom_call.1} parent=39 // pred_fallthru
          _
        // Predicated region
        $region45: #{tpu_custom_call.1} parent=39 // pred_check
          %p661 = pneg %p115
        $region46: #{tpu_custom_call.1} parent=39 // pred_check_branch
          %663 = sbr.rel (%p661) target = $region48
        $region47: #{tpu_custom_call.1} parent=39 // pred_region
          %s664 = sand.u32 %s100, 1
          %s665 = scalar_lea.sflag [#allocation5], %s664
          %s666 = sand.u32 %s100, 1
          %s667 = smul.addr %s666, 4
          %s668 = scalar_lea.vmem [#allocation4], %s667
          %670 = dma.done %s665, 64
        $region48: #{tpu_custom_call.1} parent=39 // pred_fallthru
          _
        // Predicated region
        $region49: #{tpu_custom_call.1} parent=39 // pred_check
          %p671 = pneg %p143
        $region50: #{tpu_custom_call.1} parent=39 // pred_check_branch
          %673 = sbr.rel (%p671) target = $region52
        $region51: #{tpu_custom_call.1} parent=39 // pred_region
          %p674 = scmp.lt.s32.totalorder %s27, 1
          %s675 = scalar_select %p674, %s27, 1
          %p676 = scmp.lt.s32.totalorder %s28, 0
          %s677 = scalar_select %p676, %s28, 0
          %s678 = smul.addr %s675, 2
          %s679 = sadd.s32 %s677, %s678
          %s680 = smul.addr %s679, 8
          %s681 = scalar_lea.vmem %s3, %s680
        $region52: #{tpu_custom_call.1} parent=39 // pred_fallthru
          _
      $region40: #{tpu_custom_call.1} parent=5 // pred_fallthru
        _
    $region6: #{tpu_custom_call.1} parent=1 // loop_footer
      %s20 = sadd.s32 1, %s16
    $region7: #{tpu_custom_call.1} parent=1 // loop_footer_branch
      %15 = sbr.rel target = $region3
    $region8: #{tpu_custom_call.1} parent=1 // loop_exit
      _
    %682 = vsyncpa [#allocation3], 1
    %s683 = scalar_lea.sflag [#allocation3], 1
    %684 = vsyncpa %s683, 1
    %685 = vsyncpa [#allocation5], 1
    %s686 = scalar_lea.sflag [#allocation5], 1
    %687 = vsyncpa %s686, 1

</llo_original>
